<compile_context>
chip_gen: v5e
topology: v5e:2x2
jax: 0.10.0
libtpu: 0.0.40
codegen_flags: <defaults>
</compile_context>

<pallas_src>
import math

import jax
import jax.numpy as jnp
from jax.experimental import pallas as pl
from jax.experimental.pallas import tpu as pltpu


def _round_up(x, m):
    return (x + m - 1) // m * m


# ----------------------------- kernels --------------------------------------

def _noisy_linear_train_kernel(x_ref, wmu_ref, wsig_ref, weps_ref, b_ref,
                               o_ref, acc_ref):
    k = pl.program_id(1)

    @pl.when(k == 0)
    def _():
        acc_ref[...] = jnp.zeros_like(acc_ref)

    # Elementwise noise combine (VPU) fused with the matmul tile (MXU).
    w = wmu_ref[...] + wsig_ref[...] * weps_ref[...]                 # (TK, TN)
    acc_ref[...] += jnp.dot(x_ref[...], w, preferred_element_type=jnp.float32)

    @pl.when(k == pl.num_programs(1) - 1)
    def _():
        o_ref[...] = (acc_ref[...] + b_ref[...]).astype(o_ref.dtype)


def _linear_kernel(x_ref, w_ref, b_ref, o_ref, acc_ref):
    k = pl.program_id(1)

    @pl.when(k == 0)
    def _():
        acc_ref[...] = jnp.zeros_like(acc_ref)

    acc_ref[...] += jnp.dot(x_ref[...], w_ref[...],
                            preferred_element_type=jnp.float32)

    @pl.when(k == pl.num_programs(1) - 1)
    def _():
        o_ref[...] = (acc_ref[...] + b_ref[...]).astype(o_ref.dtype)


# ----------------------------- wrappers --------------------------------------

def _vmem_limit_bytes(n_weight_inputs, b_pad, tk, tn, itemsize=4):
    # Per-step VMEM: weight tiles + x tile + bias row (padded to 8 sublanes)
    # + output tile, 2-deep pipelining, plus the accumulator scratch.
    in_bytes = (n_weight_inputs * tk * tn + b_pad * tk + 8 * tn) * itemsize
    out_bytes = b_pad * tn * itemsize
    acc_bytes = b_pad * tn * 4
    total = 2 * (in_bytes + out_bytes) + acc_bytes
    # Explicit limit with headroom; cap below v7x's 64 MiB physical VMEM.
    return int(min(max(total + (4 << 20), 16 << 20), 48 << 20))


def _pad2(a, rows, cols):
    pr, pc = rows - a.shape[0], cols - a.shape[1]
    if pr == 0 and pc == 0:
        return a
    return jnp.pad(a, ((0, pr), (0, pc)))


def _tiled_linear(x, w_t, bias_row, *extra_w_t, tn=512, tk=512):
    """y = x @ W + bias, with W = w_t (one array) or mu + sigma*eps (three).

    x: (B, K); w_t / extra_w_t: (K, N) (already transposed); bias_row: (1, N).
    """
    B, K = x.shape
    N = w_t.shape[1]

    # Pad to (8, 128) multiples, then to tile multiples.
    B_pad = _round_up(B, 8)
    K_pad = _round_up(K, 128)
    N_pad = _round_up(N, 128)
    TK = min(tk, K_pad)
    TN = min(tn, N_pad)
    K_pad = _round_up(K_pad, TK)
    N_pad = _round_up(N_pad, TN)

    x_p = _pad2(x, B_pad, K_pad)
    w_ps = [_pad2(w, K_pad, N_pad) for w in (w_t,) + extra_w_t]
    b_p = _pad2(bias_row, 1, N_pad)

    n_w = len(w_ps)
    kernel = _linear_kernel if n_w == 1 else _noisy_linear_train_kernel

    grid = (N_pad // TN, K_pad // TK)                 # reduction axis (K) last
    w_spec = pl.BlockSpec((TK, TN), lambda j, k: (k, j))

    out = pl.pallas_call(
        kernel,
        out_shape=jax.ShapeDtypeStruct((B_pad, N_pad), x.dtype),
        grid=grid,
        in_specs=([pl.BlockSpec((B_pad, TK), lambda j, k: (0, k))]
                  + [w_spec] * n_w
                  + [pl.BlockSpec((1, TN), lambda j, k: (0, j))]),
        out_specs=pl.BlockSpec((B_pad, TN), lambda j, k: (0, j)),
        scratch_shapes=[pltpu.VMEM((B_pad, TN), jnp.float32)],
        compiler_params=pltpu.CompilerParams(
            dimension_semantics=("parallel", "arbitrary"),
            vmem_limit_bytes=_vmem_limit_bytes(n_w, B_pad, TK, TN),
        ),
    )(x_p, *w_ps, b_p)

    return out[:B, :N]


def noisy_linear(x, weight_mu, weight_sigma, weight_epsilon,
                 bias_mu, bias_sigma, bias_epsilon, training=True,
                 tn=512, tk=512):
    """Pallas NoisyLinear forward. x: (B, in_features) -> (B, out_features)."""
    out_f = weight_mu.shape[0]
    if training:
        # Fold the 3 bias arrays into one (1, out) row in the wrapper.
        bias = (bias_mu + bias_sigma * bias_epsilon).reshape(1, out_f)
        return _tiled_linear(x, weight_mu.T, bias,
                             weight_sigma.T, weight_epsilon.T, tn=tn, tk=tk)
    # Eval path: mu-only kernel, sigma/epsilon never leave HBM.
    return _tiled_linear(x, weight_mu.T, bias_mu.reshape(1, out_f), tn=tn, tk=tk)


def linear_with_cached_weight(x, weight, bias, tn=512, tk=512):
    """For callers that resample noise rarely: precombine
    weight = mu + sigma*eps (and bias) once, then reuse this plain linear
    kernel for every forward -> 1/3 the weight HBM traffic of the fused path.
    weight: (out, in) torch layout; bias: (out,)."""
    return _tiled_linear(x, weight.T, bias.reshape(1, -1), tn=tn, tk=tk)


# ------------------ deterministic parameter / noise construction -------------

def _scale_noise(key, size):
    x = jax.random.normal(key, (size,), dtype=jnp.float32)
    return jnp.sign(x) * jnp.sqrt(jnp.abs(x))


def make_noisy_linear_params(key, in_features, out_features, std_init=0.4):
    k_wmu, k_wsig, k_bmu, k_ein, k_eout, k_beps = jax.random.split(key, 6)

    mu_range = 1.0 / math.sqrt(in_features)
    sig_lo = std_init / math.sqrt(out_features)

    weight_mu = jax.random.uniform(k_wmu, (out_features, in_features),
                                   minval=-mu_range, maxval=mu_range,
                                   dtype=jnp.float32)
    # spec module: weight_sigma.uniform_(sig_lo)  ==> U(sig_lo, 1.0)
    weight_sigma = jax.random.uniform(k_wsig, (out_features, in_features),
                                      minval=sig_lo, maxval=1.0,
                                      dtype=jnp.float32)
    bias_mu = jax.random.uniform(k_bmu, (out_features,),
                                 minval=-mu_range, maxval=mu_range,
                                 dtype=jnp.float32)
    bias_sigma = jnp.full((out_features,), sig_lo, dtype=jnp.float32)

    eps_in = _scale_noise(k_ein, in_features)
    eps_out = _scale_noise(k_eout, out_features)
    weight_epsilon = jnp.outer(eps_out, eps_in)           # ger(eps_out, eps_in)
    bias_epsilon = _scale_noise(k_beps, out_features)

    return dict(weight_mu=weight_mu, weight_sigma=weight_sigma,
                weight_epsilon=weight_epsilon, bias_mu=bias_mu,
                bias_sigma=bias_sigma, bias_epsilon=bias_epsilon)


def _reference(x, p, training=True):
    if training:
        w = p["weight_mu"] + p["weight_sigma"] * p["weight_epsilon"]
        b = p["bias_mu"] + p["bias_sigma"] * p["bias_epsilon"]
    else:
        w, b = p["weight_mu"], p["bias_mu"]
    return x @ w.T + b


if __name__ == "__main__":
    key = jax.random.PRNGKey(0)
    k_param, k_x, k_param2, k_x2 = jax.random.split(key, 4)

    # Module-sized small test (B=8, in=32, out=16).
    batch, in_features, out_features = 8, 32, 16
    params = make_noisy_linear_params(k_param, in_features, out_features, 0.4)
    x = jax.random.normal(k_x, (batch, in_features), dtype=jnp.float32)

    y_train = noisy_linear(x, params["weight_mu"], params["weight_sigma"],
                           params["weight_epsilon"], params["bias_mu"],
                           params["bias_sigma"], params["bias_epsilon"],
                           training=True)
    y_train = jax.block_until_ready(y_train)
    assert y_train.shape == (batch, out_features)
    assert jnp.allclose(y_train, _reference(x, params, True), atol=1e-5, rtol=1e-5)

    y_eval = noisy_linear(x, params["weight_mu"], params["weight_sigma"],
                          params["weight_epsilon"], params["bias_mu"],
                          params["bias_sigma"], params["bias_epsilon"],
                          training=False)
    y_eval = jax.block_until_ready(y_eval)
    assert jnp.allclose(y_eval, _reference(x, params, False), atol=1e-5, rtol=1e-5)

    # Second test with odd shapes + small tiles to exercise padding and a
    # multi-tile grid (2x2) with accumulation over K.
    b2, in2, out2 = 5, 160, 144
    params2 = make_noisy_linear_params(k_param2, in2, out2, 0.4)
    x2 = jax.random.normal(k_x2, (b2, in2), dtype=jnp.float32)
    y2 = noisy_linear(x2, params2["weight_mu"], params2["weight_sigma"],
                      params2["weight_epsilon"], params2["bias_mu"],
                      params2["bias_sigma"], params2["bias_epsilon"],
                      training=True, tn=128, tk=128)
    y2 = jax.block_until_ready(y2)
    assert y2.shape == (b2, out2)
    assert jnp.allclose(y2, _reference(x2, params2, True), atol=1e-4, rtol=1e-4)

    # Cached-weight path (precombined noise) uses the plain linear kernel.
    w_cached = params["weight_mu"] + params["weight_sigma"] * params["weight_epsilon"]
    b_cached = params["bias_mu"] + params["bias_sigma"] * params["bias_epsilon"]
    y_cached = jax.block_until_ready(linear_with_cached_weight(x, w_cached, b_cached))
    assert jnp.allclose(y_cached, _reference(x, params, True), atol=1e-5, rtol=1e-5)

    print("KERNEL_OK")
</pallas_src>

<mosaic_0001>
module attributes {stable_mosaic.version = 11 : i64} {
  func.func @_noisy_linear_train_kernel(%arg0: i32, %arg1: i32, %arg2: memref<8x128xf32, #tpu.memory_space<vmem>>, %arg3: memref<128x128xf32, #tpu.memory_space<vmem>>, %arg4: memref<128x128xf32, #tpu.memory_space<vmem>>, %arg5: memref<128x128xf32, #tpu.memory_space<vmem>>, %arg6: memref<1x128xf32, #tpu.memory_space<vmem>>, %arg7: memref<8x128xf32, #tpu.memory_space<vmem>>, %arg8: memref<8x128xf32, #tpu.memory_space<vmem>>) attributes {dimension_semantics = [#tpu.dimension_semantics<parallel>, #tpu.dimension_semantics<arbitrary>], iteration_bounds = array<i64: 1, 1>, scalar_prefetch = 0 : i64, scratch_operands = 1 : i64, tpu.core_type = #tpu.core_type<tc>, window_params = [{transform_indices = @transform_0, window_bounds = array<i64: 8, 128>}, {transform_indices = @transform_1, window_bounds = array<i64: 128, 128>}, {transform_indices = @transform_2, window_bounds = array<i64: 128, 128>}, {transform_indices = @transform_3, window_bounds = array<i64: 128, 128>}, {transform_indices = @transform_4, window_bounds = array<i64: 1, 128>}, {transform_indices = @transform_5, window_bounds = array<i64: 8, 128>}]} {
    %c0_i32 = arith.constant 0 : i32
    %0 = arith.cmpi eq, %arg1, %c0_i32 : i32
    %1 = arith.extui %0 : i1 to i32
    %c0_i32_0 = arith.constant 0 : i32
    %2 = arith.cmpi ne, %1, %c0_i32_0 : i32
    scf.if %2 {
      %cst_14 = arith.constant 0.000000e+00 : f32
      %16 = vector.broadcast %cst_14 : f32 to vector<8x128xf32>
      %c0_15 = arith.constant 0 : index
      %c0_16 = arith.constant 0 : index
      %17 = vector.load %arg8[%c0_15, %c0_16] : memref<8x128xf32, #tpu.memory_space<vmem>>, vector<8x128xf32>
      tpu.vector_store %arg8[%c0_15, %c0_16], %16 {strides = array<i32>} : memref<8x128xf32, #tpu.memory_space<vmem>>, vector<8x128xf32>,
    } else {
    }
    %c0 = arith.constant 0 : index
    %c0_1 = arith.constant 0 : index
    %3 = vector.load %arg3[%c0, %c0_1] : memref<128x128xf32, #tpu.memory_space<vmem>>, vector<128x128xf32>
    %c0_2 = arith.constant 0 : index
    %c0_3 = arith.constant 0 : index
    %4 = vector.load %arg4[%c0_2, %c0_3] : memref<128x128xf32, #tpu.memory_space<vmem>>, vector<128x128xf32>
    %c0_4 = arith.constant 0 : index
    %c0_5 = arith.constant 0 : index
    %5 = vector.load %arg5[%c0_4, %c0_5] : memref<128x128xf32, #tpu.memory_space<vmem>>, vector<128x128xf32>
    %6 = arith.mulf %4, %5 : vector<128x128xf32>
    %7 = arith.addf %3, %6 : vector<128x128xf32>
    %c0_6 = arith.constant 0 : index
    %c0_7 = arith.constant 0 : index
    %8 = vector.load %arg8[%c0_6, %c0_7] : memref<8x128xf32, #tpu.memory_space<vmem>>, vector<8x128xf32>
    %c0_8 = arith.constant 0 : index
    %c0_9 = arith.constant 0 : index
    %9 = vector.load %arg2[%c0_8, %c0_9] : memref<8x128xf32, #tpu.memory_space<vmem>>, vector<8x128xf32>
    %cst = arith.constant dense<0.000000e+00> : vector<8x128xf32>
    %10 = tpu.matmul %9, %7, %cst {dimension_numbers = #tpu.dot_dimension_numbers<[1], [0], [0], [1], [0, 0, 1, 1], [], []>} : vector<8x128xf32>, vector<128x128xf32>, vector<8x128xf32> -> vector<8x128xf32>
    %11 = arith.addf %8, %10 : vector<8x128xf32>
    %c0_10 = arith.constant 0 : index
    %c0_11 = arith.constant 0 : index
    %12 = vector.load %arg8[%c0_10, %c0_11] : memref<8x128xf32, #tpu.memory_space<vmem>>, vector<8x128xf32>
    tpu.vector_store %arg8[%c0_10, %c0_11], %11 {strides = array<i32>} : memref<8x128xf32, #tpu.memory_space<vmem>>, vector<8x128xf32>,
    %c0_i32_12 = arith.constant 0 : i32
    %13 = arith.cmpi eq, %arg1, %c0_i32_12 : i32
    %14 = arith.extui %13 : i1 to i32
    %c0_i32_13 = arith.constant 0 : i32
    %15 = arith.cmpi ne, %14, %c0_i32_13 : i32
    scf.if %15 {
      %c0_14 = arith.constant 0 : index
      %c0_15 = arith.constant 0 : index
      %16 = vector.load %arg8[%c0_14, %c0_15] : memref<8x128xf32, #tpu.memory_space<vmem>>, vector<8x128xf32>
      %c0_16 = arith.constant 0 : index
      %c0_17 = arith.constant 0 : index
      %17 = vector.load %arg6[%c0_16, %c0_17] : memref<1x128xf32, #tpu.memory_space<vmem>>, vector<1x128xf32>
      %18 = vector.broadcast %17 : vector<1x128xf32> to vector<8x128xf32>
      %19 = arith.addf %16, %18 : vector<8x128xf32>
      %c0_18 = arith.constant 0 : index
      %c0_19 = arith.constant 0 : index
      %20 = vector.load %arg7[%c0_18, %c0_19] : memref<8x128xf32, #tpu.memory_space<vmem>>, vector<8x128xf32>
      tpu.vector_store %arg7[%c0_18, %c0_19], %19 {strides = array<i32>} : memref<8x128xf32, #tpu.memory_space<vmem>>, vector<8x128xf32>,
    } else {
    }
    return
  }
  func.func @transform_0(%arg0: i32, %arg1: i32) -> (i32, i32) {
    %c0_i32 = arith.constant 0 : i32
    %c0_i32_0 = arith.constant 0 : i32
    return %c0_i32, %arg1 : i32, i32
  }
  func.func @transform_1(%arg0: i32, %arg1: i32) -> (i32, i32) {
    %c0_i32 = arith.constant 0 : i32
    return %arg1, %arg0 : i32, i32
  }
  func.func @transform_2(%arg0: i32, %arg1: i32) -> (i32, i32) {
    %c0_i32 = arith.constant 0 : i32
    return %arg1, %arg0 : i32, i32
  }
  func.func @transform_3(%arg0: i32, %arg1: i32) -> (i32, i32) {
    %c0_i32 = arith.constant 0 : i32
    return %arg1, %arg0 : i32, i32
  }
  func.func @transform_4(%arg0: i32, %arg1: i32) -> (i32, i32) {
    %c0_i32 = arith.constant 0 : i32
    %c0_i32_0 = arith.constant 0 : i32
    return %c0_i32, %arg0 : i32, i32
  }
  func.func @transform_5(%arg0: i32, %arg1: i32) -> (i32, i32) {
    %c0_i32 = arith.constant 0 : i32
    %c0_i32_0 = arith.constant 0 : i32
    return %c0_i32, %arg0 : i32, i32
  }
}

</mosaic_0001>

<llo_original>
// kernel: tpu_custom_call.1
$region0: #{tpu_custom_call.1}
  #allocation0 [shape = 'u32[]', space=smem, size = 0x4, offset = 0x4, fixed_abs, tag = 'smem constant byte address 0x4 - core index']
  #allocation1 [shape = 'u32[72,128]{1,0:T(1,128)}', space=vmem, size = 0x9000, scoped, tag = 'internal scratch']
  #allocation2 [shape = 'f32[8,128]{1,0:T(8,128)}', space=vmem, size = 0x1000, scoped, tag = 'scratch operand']
  %s0 = inlined_call_operand.hbm [shape: f32[8,128], index: 0, kind: input, shape index: {}]
  %s1 = inlined_call_operand.hbm [shape: f32[128,128], index: 1, kind: input, shape index: {}]
  %s2 = inlined_call_operand.hbm [shape: f32[128,128], index: 2, kind: input, shape index: {}]
  %s3 = inlined_call_operand.hbm [shape: f32[128,128], index: 3, kind: input, shape index: {}]
  %s4 = inlined_call_operand.vmem [shape: f32[1,128], index: 4, kind: input, shape index: {}]
  %s5 = inlined_call_operand.hbm [shape: f32[8,128], index: 5, kind: output, shape index: {}]
  %s6 = sld [smem:[#allocation0]]
  $region54: #{tpu_custom_call.1} parent=0
    _
  %s8 = ssub.s32 1, %s6
  %s9 = scalar_select 0, %s8, %s6
  $region1: #{tpu_custom_call.1} parent=0
    #allocation3 [shape = 'u8[4096]{0}', space=vmem, size = 0x1000, scoped, tag = 'input window, operand 0, single buffered']
    #allocation4 [shape = 's32[1]{0}', space=sflag, size = 0x4, scoped, tag = 'scoped memory for tpu_custom_call.1']
    #allocation5 [shape = 's32[1]{0}', space=sflag, size = 0x4, scoped, tag = 'scoped memory for tpu_custom_call.1']
    #allocation6 [shape = 'u8[65536]{0}', space=vmem, size = 0x10000, scoped, tag = 'input window, operand 1, single buffered']
    #allocation7 [shape = 's32[1]{0}', space=sflag, size = 0x4, scoped, tag = 'scoped memory for tpu_custom_call.1']
    #allocation8 [shape = 'u8[65536]{0}', space=vmem, size = 0x10000, scoped, tag = 'input window, operand 2, single buffered']
    #allocation9 [shape = 'u8[65536]{0}', space=vmem, size = 0x10000, scoped, tag = 'input window, operand 3, single buffered']
    #allocation10 [shape = 's32[1]{0}', space=sflag, size = 0x4, scoped, tag = 'scoped memory for tpu_custom_call.1']
    #allocation11 [shape = 'u8[4096]{0}', space=vmem, size = 0x1000, scoped, tag = 'output window, operand 0, single buffered']
    %10 = vsyncpa [#allocation4], 0
    %11 = vsyncpa [#allocation7], 0
    %12 = vsyncpa [#allocation10], 0
    %13 = vsyncpa [#allocation5], 0
    // Predicated region
    $region2: #{tpu_custom_call.1} parent=1 // pred_check
      _
    $region3: #{tpu_custom_call.1} parent=1 // pred_check_branch
      %15 = sbr.rel (0) target = $region5
    $region4: #{tpu_custom_call.1} parent=1 // pred_region
      %17 = vsyncadd [#allocation4], 0
      %s19 = sshll.u32 %s0, 4
      %s20 = int_to_ptr.hbm [resolvable:$true] %s19
      %s21 = sshll.u32 [#allocation3], 4
      %s22 = int_to_ptr.vmem [resolvable:$true] %s21
      %24 = dma.hbm_to_vmem [thread:$0]  %s20, 128, %s22, [#allocation4]
    $region5: #{tpu_custom_call.1} parent=1 // pred_fallthru
      _
    // Predicated region
    $region6: #{tpu_custom_call.1} parent=1 // pred_check
      _
    $region7: #{tpu_custom_call.1} parent=1 // pred_check_branch
      %26 = sbr.rel (0) target = $region9
    $region8: #{tpu_custom_call.1} parent=1 // pred_region
      %28 = vsyncadd [#allocation7], 0
      %s29 = sshll.u32 %s1, 4
      %s30 = int_to_ptr.hbm [resolvable:$true] %s29
      %s31 = sshll.u32 [#allocation6], 4
      %s32 = int_to_ptr.vmem [resolvable:$true] %s31
      %37 = dma.hbm_to_vmem [thread:$0]  %s30, 2048, %s32, [#allocation7], 128, 128, 8
    $region9: #{tpu_custom_call.1} parent=1 // pred_fallthru
      _
    // Predicated region
    $region10: #{tpu_custom_call.1} parent=1 // pred_check
      _
    $region11: #{tpu_custom_call.1} parent=1 // pred_check_branch
      %39 = sbr.rel (0) target = $region13
    $region12: #{tpu_custom_call.1} parent=1 // pred_region
      %41 = vsyncadd [#allocation7], 0
      %s42 = sshll.u32 %s2, 4
      %s43 = int_to_ptr.hbm [resolvable:$true] %s42
      %s44 = sshll.u32 [#allocation8], 4
      %s45 = int_to_ptr.vmem [resolvable:$true] %s44
      %50 = dma.hbm_to_vmem [thread:$0]  %s43, 2048, %s45, [#allocation7], 128, 128, 8
    $region13: #{tpu_custom_call.1} parent=1 // pred_fallthru
      _
    // Predicated region
    $region14: #{tpu_custom_call.1} parent=1 // pred_check
      _
    $region15: #{tpu_custom_call.1} parent=1 // pred_check_branch
      %52 = sbr.rel (0) target = $region17
    $region16: #{tpu_custom_call.1} parent=1 // pred_region
      %54 = vsyncadd [#allocation10], 0
      %s55 = sshll.u32 %s3, 4
      %s56 = int_to_ptr.hbm [resolvable:$true] %s55
      %s57 = sshll.u32 [#allocation9], 4
      %s58 = int_to_ptr.vmem [resolvable:$true] %s57
      %63 = dma.hbm_to_vmem [thread:$0]  %s56, 2048, %s58, [#allocation10], 128, 128, 8
    $region17: #{tpu_custom_call.1} parent=1 // pred_fallthru
      _
    // Predicated region
    $region18: #{tpu_custom_call.1} parent=1 // pred_check
      _
    $region19: #{tpu_custom_call.1} parent=1 // pred_check_branch
      %65 = sbr.rel (0) target = $region21
    $region20: #{tpu_custom_call.1} parent=1 // pred_region
      _
    $region21: #{tpu_custom_call.1} parent=1 // pred_fallthru
      _
    // Predicated region
    $region22: #{tpu_custom_call.1} parent=1 // pred_check
      _
    $region23: #{tpu_custom_call.1} parent=1 // pred_check_branch
      %67 = sbr.rel (0) target = $region25
    $region24: #{tpu_custom_call.1} parent=1 // pred_region
      %69 = dma.done [#allocation4], 128
    $region25: #{tpu_custom_call.1} parent=1 // pred_fallthru
      _
    // Predicated region
    $region26: #{tpu_custom_call.1} parent=1 // pred_check
      _
    $region27: #{tpu_custom_call.1} parent=1 // pred_check_branch
      %71 = sbr.rel (0) target = $region29
    $region28: #{tpu_custom_call.1} parent=1 // pred_region
      %73 = dma.done [#allocation7], 2048
    $region29: #{tpu_custom_call.1} parent=1 // pred_fallthru
      _
    // Predicated region
    $region30: #{tpu_custom_call.1} parent=1 // pred_check
      _
    $region31: #{tpu_custom_call.1} parent=1 // pred_check_branch
      %75 = sbr.rel (0) target = $region33
    $region32: #{tpu_custom_call.1} parent=1 // pred_region
      %77 = dma.done [#allocation7], 2048
    $region33: #{tpu_custom_call.1} parent=1 // pred_fallthru
      _
    // Predicated region
    $region34: #{tpu_custom_call.1} parent=1 // pred_check
      _
    $region35: #{tpu_custom_call.1} parent=1 // pred_check_branch
      %79 = sbr.rel (0) target = $region37
    $region36: #{tpu_custom_call.1} parent=1 // pred_region
      %81 = dma.done [#allocation10], 2048
    $region37: #{tpu_custom_call.1} parent=1 // pred_fallthru
      _
    %p82 = scmp.eq.s32.totalorder 0, 0
    // Predicated region
    $region38: #{tpu_custom_call.1} parent=1 // pred_check
      %p83 = pneg %p82
    $region39: #{tpu_custom_call.1} parent=1 // pred_check_branch
      %85 = sbr.rel (%p83) target = $region41
    $region40: #{tpu_custom_call.1} parent=1 // pred_region
      %86 = vst [vmem:[#allocation2] sm:$0xff] 0.0
    $region41: #{tpu_custom_call.1} parent=1 // pred_fallthru
      _
    %v87 = vld [vmem:[#allocation6] sm:$0xff]
    %v88 = vld [vmem:[#allocation6 + $0x8] sm:$0xff]
    %v89 = vld [vmem:[#allocation6 + $0x10] sm:$0xff]
    %v90 = vld [vmem:[#allocation6 + $0x18] sm:$0xff]
    %v91 = vld [vmem:[#allocation6 + $0x20] sm:$0xff]
    %v92 = vld [vmem:[#allocation6 + $0x28] sm:$0xff]
    %v93 = vld [vmem:[#allocation6 + $0x30] sm:$0xff]
    %v94 = vld [vmem:[#allocation6 + $0x38] sm:$0xff]
    %v95 = vld [vmem:[#allocation6 + $0x40] sm:$0xff]
    %v96 = vld [vmem:[#allocation6 + $0x48] sm:$0xff]
    %v97 = vld [vmem:[#allocation6 + $0x50] sm:$0xff]
    %v98 = vld [vmem:[#allocation6 + $0x58] sm:$0xff]
    %v99 = vld [vmem:[#allocation6 + $0x60] sm:$0xff]
    %v100 = vld [vmem:[#allocation6 + $0x68] sm:$0xff]
    %v101 = vld [vmem:[#allocation6 + $0x70] sm:$0xff]
    %v102 = vld [vmem:[#allocation6 + $0x78] sm:$0xff]
    %v103 = vld [vmem:[#allocation8] sm:$0xff]
    %v104 = vld [vmem:[#allocation8 + $0x8] sm:$0xff]
    %v105 = vld [vmem:[#allocation8 + $0x10] sm:$0xff]
    %v106 = vld [vmem:[#allocation8 + $0x18] sm:$0xff]
    %v107 = vld [vmem:[#allocation8 + $0x20] sm:$0xff]
    %v108 = vld [vmem:[#allocation8 + $0x28] sm:$0xff]
    %v109 = vld [vmem:[#allocation8 + $0x30] sm:$0xff]
    %v110 = vld [vmem:[#allocation8 + $0x38] sm:$0xff]
    %v111 = vld [vmem:[#allocation8 + $0x40] sm:$0xff]
    %v112 = vld [vmem:[#allocation8 + $0x48] sm:$0xff]
    %v113 = vld [vmem:[#allocation8 + $0x50] sm:$0xff]
    %v114 = vld [vmem:[#allocation8 + $0x58] sm:$0xff]
    %v115 = vld [vmem:[#allocation8 + $0x60] sm:$0xff]
    %v116 = vld [vmem:[#allocation8 + $0x68] sm:$0xff]
    %v117 = vld [vmem:[#allocation8 + $0x70] sm:$0xff]
    %v118 = vld [vmem:[#allocation8 + $0x78] sm:$0xff]
    %v119 = vld [vmem:[#allocation9] sm:$0xff]
    %v120 = vld [vmem:[#allocation9 + $0x8] sm:$0xff]
    %v121 = vld [vmem:[#allocation9 + $0x10] sm:$0xff]
    %v122 = vld [vmem:[#allocation9 + $0x18] sm:$0xff]
    %v123 = vld [vmem:[#allocation9 + $0x20] sm:$0xff]
    %v124 = vld [vmem:[#allocation9 + $0x28] sm:$0xff]
    %v125 = vld [vmem:[#allocation9 + $0x30] sm:$0xff]
    %v126 = vld [vmem:[#allocation9 + $0x38] sm:$0xff]
    %v127 = vld [vmem:[#allocation9 + $0x40] sm:$0xff]
    %v128 = vld [vmem:[#allocation9 + $0x48] sm:$0xff]
    %v129 = vld [vmem:[#allocation9 + $0x50] sm:$0xff]
    %v130 = vld [vmem:[#allocation9 + $0x58] sm:$0xff]
    %v131 = vld [vmem:[#allocation9 + $0x60] sm:$0xff]
    %v132 = vld [vmem:[#allocation9 + $0x68] sm:$0xff]
    %v133 = vld [vmem:[#allocation9 + $0x70] sm:$0xff]
    %v134 = vld [vmem:[#allocation9 + $0x78] sm:$0xff]
    %v135 = vmul.f32 %v103, %v119
    %v136 = vmul.f32 %v104, %v120
    %v137 = vmul.f32 %v105, %v121
    %v138 = vmul.f32 %v106, %v122
    %v139 = vmul.f32 %v107, %v123
    %v140 = vmul.f32 %v108, %v124
    %v141 = vmul.f32 %v109, %v125
    %v142 = vmul.f32 %v110, %v126
    %v143 = vmul.f32 %v111, %v127
    %v144 = vmul.f32 %v112, %v128
    %v145 = vmul.f32 %v113, %v129
    %v146 = vmul.f32 %v114, %v130
    %v147 = vmul.f32 %v115, %v131
    %v148 = vmul.f32 %v116, %v132
    %v149 = vmul.f32 %v117, %v133
    %v150 = vmul.f32 %v118, %v134
    %v151 = vadd.f32 %v87, %v135
    %v152 = vadd.f32 %v88, %v136
    %v153 = vadd.f32 %v89, %v137
    %v154 = vadd.f32 %v90, %v138
    %v155 = vadd.f32 %v91, %v139
    %v156 = vadd.f32 %v92, %v140
    %v157 = vadd.f32 %v93, %v141
    %v158 = vadd.f32 %v94, %v142
    %v159 = vadd.f32 %v95, %v143
    %v160 = vadd.f32 %v96, %v144
    %v161 = vadd.f32 %v97, %v145
    %v162 = vadd.f32 %v98, %v146
    %v163 = vadd.f32 %v99, %v147
    %v164 = vadd.f32 %v100, %v148
    %v165 = vadd.f32 %v101, %v149
    %v166 = vadd.f32 %v102, %v150
    %v167 = vld [vmem:[#allocation2] sm:$0xff]
    %v168 = vld [vmem:[#allocation3] sm:$0xff]
    %169 = vmatpush.msra.mxu0 %v166
    %170 = vmatpush.msra.mxu0 %v165
    %171 = vmatpush.msra.mxu0 %v164
    %172 = vmatpush.msra.mxu0 %v163
    %173 = vmatpush.msra.mxu0 %v162
    %174 = vmatpush.msra.mxu0 %v161
    %175 = vmatpush.msra.mxu0 %v160
    %176 = vmatpush.msra.mxu0 %v159
    %177 = vmatpush.msra.mxu0 %v158
    %178 = vmatpush.msra.mxu0 %v157
    %179 = vmatpush.msra.mxu0 %v156
    %180 = vmatpush.msra.mxu0 %v155
    %181 = vmatpush.msra.mxu0 %v154
    %182 = vmatpush.msra.mxu0 %v153
    %183 = vmatpush.msra.mxu0 %v152
    %184 = vmatpush.msra.mxu0 %v151
    %185 = vmatmul.f32.gmra.mxu0 %v168
    %v186 = vpop.f32.mrf.mxu0
    %v187 = vadd.f32 0.0, %v186
    %188 = vdwg.mxu0
    %v189 = vadd.f32 %v167, %v187
    %190 = vst [vmem:[#allocation2] sm:$0xff] %v189
    // Predicated region
    $region42: #{tpu_custom_call.1} parent=1 // pred_check
      %p191 = pneg %p82
    $region43: #{tpu_custom_call.1} parent=1 // pred_check_branch
      %193 = sbr.rel (%p191) target = $region45
    $region44: #{tpu_custom_call.1} parent=1 // pred_region
      %v194 = vld [vmem:[#allocation2] sm:$0xff]
      %v195 = vld [vmem:[%s4] sm:$0x1]
      %v197 = vperm.slane %v195, 0
      %v199 = vadd.f32 %v194, %v197
      %200 = vst [vmem:[#allocation11] sm:$0xff] %v199
    $region45: #{tpu_custom_call.1} parent=1 // pred_fallthru
      _
    // Predicated region
    $region46: #{tpu_custom_call.1} parent=1 // pred_check
      _
    $region47: #{tpu_custom_call.1} parent=1 // pred_check_branch
      %202 = sbr.rel (0) target = $region49
    $region48: #{tpu_custom_call.1} parent=1 // pred_region
      %204 = vsyncadd [#allocation5], 0
      %s206 = sshll.u32 [#allocation11], 4
      %s207 = int_to_ptr.vmem [resolvable:$true] %s206
      %s208 = sshll.u32 %s5, 4
      %s209 = int_to_ptr.hbm [resolvable:$true] %s208
      %211 = dma.vmem_to_hbm [thread:$0]  %s207, 128, %s209, [#allocation5]
    $region49: #{tpu_custom_call.1} parent=1 // pred_fallthru
      _
    // Predicated region
    $region50: #{tpu_custom_call.1} parent=1 // pred_check
      _
    $region51: #{tpu_custom_call.1} parent=1 // pred_check_branch
      %213 = sbr.rel (0) target = $region53
    $region52: #{tpu_custom_call.1} parent=1 // pred_region
      %215 = dma.done [#allocation5], 128
    $region53: #{tpu_custom_call.1} parent=1 // pred_fallthru
      _
    %216 = vsyncpa [#allocation4], 1
    %217 = vsyncpa [#allocation7], 1
    %218 = vsyncpa [#allocation10], 1
    %219 = vsyncpa [#allocation5], 1

</llo_original>
